<compile_context>
chip_gen: v7x
topology: tpu7x:2x2x1
jax: 0.10.0
libtpu: 0.0.40
codegen_flags: <defaults>
</compile_context>

<pallas_src>
import functools

import jax
import jax.numpy as jnp
from jax import lax
from jax.experimental import pallas as pl
from jax.experimental.pallas import tpu as pltpu

_SUB, _LANE = 8, 128
_NEG_BIG = -1e30
_HALF_LOG_2PI = 0.9189385332046727  # 0.5 * log(2*pi)


def _mip_kernel(onehot_ref, logits_ref, x_ref, mu_ref, sigma_ref, o_ref,
                *, n_dis, n_rows_cont, n_cols_cont):
    """Fused MutualInformationPenalty forward.

    onehot_ref: (8, 128) one-hot discrete codes (zero rows/lanes for padding)
    logits_ref: (8, 128) Categorical logits (padding filled with -1e30)
    x_ref, mu_ref, sigma_ref: (8, 128) Normal params (padding: x=mu=0, sigma=1)
    o_ref: (1, 1) scalar loss
    """
    # --- discrete code: mean_n [ sum_k onehot * log_softmax(logits) ] ----------
    logits = logits_ref[...]
    m = jnp.max(logits, axis=-1, keepdims=True)
    z = logits - m
    lse = jnp.log(jnp.sum(jnp.exp(z), axis=-1, keepdims=True))
    log_p = z - lse                                                      # (8,128)
    lp_dis_sum = jnp.sum(onehot_ref[...] * log_p, axis=(0, 1), keepdims=True)

    # --- continuous code: mean over (N, D) of Normal(mu, sigma).log_prob(x) ----
    rows, cols = x_ref.shape
    row_idx = lax.broadcasted_iota(jnp.int32, (rows, cols), 0)
    col_idx = lax.broadcasted_iota(jnp.int32, (rows, cols), 1)
    valid = jnp.logical_and(row_idx < n_rows_cont, col_idx < n_cols_cont)

    x = x_ref[...]
    mu = mu_ref[...]
    sigma = sigma_ref[...]
    zc = (x - mu) / sigma
    lp = -0.5 * zc * zc - jnp.log(sigma) - _HALF_LOG_2PI
    lp = jnp.where(valid, lp, 0.0)
    lp_cont_sum = jnp.sum(lp, axis=(0, 1), keepdims=True)

    # reduction='mean' over the 2-vector [-mean_lp_dis, -mean_lp_cont]
    inv_n_dis = 1.0 / float(n_dis)
    inv_n_cont = 1.0 / float(n_rows_cont * n_cols_cont)
    loss = -0.5 * (lp_dis_sum * inv_n_dis + lp_cont_sum * inv_n_cont)    # (1,1)
    o_ref[...] = loss.astype(o_ref.dtype)


def _pad_to_tile(a, fill):
    """Pad a 2D array up to a lane-dense multiple of (8, 128)."""
    a = a.astype(jnp.float32)
    r, c = a.shape
    rp = max(_SUB, ((r + _SUB - 1) // _SUB) * _SUB)
    cp = max(_LANE, ((c + _LANE - 1) // _LANE) * _LANE)
    return jnp.pad(a, ((0, rp - r), (0, cp - c)), constant_values=fill)


def mutual_information_penalty(c_dis_onehot, dis_logits, c_cont, cont_mu, cont_sigma):
    """loss = mean([-mean(OneHotCategorical(logits).log_prob(c_dis)),
                    -mean(Normal(mu, sigma).log_prob(c_cont))])"""
    N, K = dis_logits.shape
    N2, D = c_cont.shape
    assert N2 == N and c_dis_onehot.shape == (N, K)
    assert cont_mu.shape == (N, D) and cont_sigma.shape == (N, D)

    # Wrapper-side layout plumbing: one lane-dense (8,128) tile per operand.
    onehot_p = _pad_to_tile(c_dis_onehot, 0.0)     # padded rows/lanes contribute 0
    logits_p = _pad_to_tile(dis_logits, _NEG_BIG)  # finite "-inf": exp underflows, no NaN
    x_p = _pad_to_tile(c_cont, 0.0)
    mu_p = _pad_to_tile(cont_mu, 0.0)
    sigma_p = _pad_to_tile(cont_sigma, 1.0)        # benign sigma for padded elements

    kernel = functools.partial(_mip_kernel,
                               n_dis=N, n_rows_cont=N, n_cols_cont=D)

    out = pl.pallas_call(
        kernel,
        out_shape=jax.ShapeDtypeStruct((1, 1), jnp.float32),
    )(onehot_p, logits_p, x_p, mu_p, sigma_p)

    return out[0, 0]


def _reference(c_dis_onehot, dis_logits, c_cont, cont_mu, cont_sigma):
    """Pure-JAX reference of the PyTorch forward."""
    log_p = jax.nn.log_softmax(dis_logits.astype(jnp.float32), axis=-1)
    lp_dis = jnp.mean(jnp.sum(c_dis_onehot * log_p, axis=-1))
    zc = (c_cont - cont_mu) / cont_sigma
    lp_cont = jnp.mean(-0.5 * zc * zc - jnp.log(cont_sigma) - _HALF_LOG_2PI)
    return jnp.mean(-1.0 * jnp.stack([lp_dis, lp_cont]))


if __name__ == "__main__":
    # Small InfoGAN-style shapes: batch=2, 10 discrete classes, 4 continuous dims.
    N, K, D = 2, 10, 4
    key = jax.random.PRNGKey(0)
    k1, k2, k3, k4, k5 = jax.random.split(key, 5)

    dis_idx = jax.random.randint(k1, (N,), 0, K)
    c_dis = jax.nn.one_hot(dis_idx, K, dtype=jnp.float32)          # sampled discrete code
    dis_logits = jax.random.normal(k2, (N, K), dtype=jnp.float32)  # Q(c_dis|x) logits

    c_cont = jax.random.normal(k3, (N, D), dtype=jnp.float32)      # sampled continuous code
    cont_mu = 0.1 * jax.random.normal(k4, (N, D), dtype=jnp.float32)
    cont_sigma = jnp.exp(0.1 * jax.random.normal(k5, (N, D), dtype=jnp.float32))

    out = jax.block_until_ready(
        mutual_information_penalty(c_dis, dis_logits, c_cont, cont_mu, cont_sigma))
    ref = jax.block_until_ready(
        _reference(c_dis, dis_logits, c_cont, cont_mu, cont_sigma))

    assert out.shape == (), out.shape
    assert jnp.abs(out - ref) < 1e-5, (float(out), float(ref))

    # TODO(synk): arbitrary torch.distributions.Distribution objects cannot be passed
    # into a Pallas kernel; only the canonical InfoGAN (OneHotCategorical, Normal)
    # pair is implemented from raw parameters.
    print("KERNEL_OK")
</pallas_src>

<mosaic_0001>
module attributes {stable_mosaic.version = 11 : i64} {
  func.func @_mip_kernel(%arg0: memref<8x128xf32, #tpu.memory_space<vmem>>, %arg1: memref<8x128xf32, #tpu.memory_space<vmem>>, %arg2: memref<8x128xf32, #tpu.memory_space<vmem>>, %arg3: memref<8x128xf32, #tpu.memory_space<vmem>>, %arg4: memref<8x128xf32, #tpu.memory_space<vmem>>, %arg5: memref<1x1xf32, #tpu.memory_space<vmem>>) attributes {dimension_semantics = [], scalar_prefetch = 0 : i64, scratch_operands = 0 : i64, tpu.core_type = #tpu.core_type<tc>} {
    %c0 = arith.constant 0 : index
    %c0_0 = arith.constant 0 : index
    %0 = vector.load %arg1[%c0, %c0_0] : memref<8x128xf32, #tpu.memory_space<vmem>>, vector<8x128xf32>
    %cst = arith.constant dense<0xFF800000> : vector<8xf32>
    %1 = vector.multi_reduction <maximumf>, %0, %cst [1] : vector<8x128xf32> to vector<8xf32>
    %2 = vector.shape_cast %1 : vector<8xf32> to vector<8x1xf32>
    %3 = vector.broadcast %2 : vector<8x1xf32> to vector<8x128xf32>
    %4 = arith.subf %0, %3 : vector<8x128xf32>
    %5 = math.exp %4 : vector<8x128xf32>
    %cst_1 = arith.constant dense<0.000000e+00> : vector<8xf32>
    %6 = vector.multi_reduction <add>, %5, %cst_1 [1] : vector<8x128xf32> to vector<8xf32>
    %7 = vector.shape_cast %6 : vector<8xf32> to vector<8x1xf32>
    %8 = math.log %7 : vector<8x1xf32>
    %9 = vector.broadcast %8 : vector<8x1xf32> to vector<8x128xf32>
    %10 = arith.subf %4, %9 : vector<8x128xf32>
    %c0_2 = arith.constant 0 : index
    %c0_3 = arith.constant 0 : index
    %11 = vector.load %arg0[%c0_2, %c0_3] : memref<8x128xf32, #tpu.memory_space<vmem>>, vector<8x128xf32>
    %12 = arith.mulf %11, %10 : vector<8x128xf32>
    %13 = vector.shape_cast %12 : vector<8x128xf32> to vector<1x8x128xf32>
    %cst_4 = arith.constant dense<0.000000e+00> : vector<1xf32>
    %14 = vector.multi_reduction <add>, %13, %cst_4 [1, 2] : vector<1x8x128xf32> to vector<1xf32>
    %15 = vector.shape_cast %14 : vector<1xf32> to vector<1x1x1xf32>
    %16 = vector.extract %15[0, 0, 0] : f32 from vector<1x1x1xf32>
    %17 = vector.broadcast %16 : f32 to vector<1x1xf32>
    %18 = tpu.iota {dimensions = array<i32: 0>} : vector<8x128xi32>
    %19 = tpu.iota {dimensions = array<i32: 1>} : vector<8x128xi32>
    %c2_i32 = arith.constant 2 : i32
    %20 = vector.broadcast %c2_i32 : i32 to vector<8x128xi32>
    %21 = arith.cmpi slt, %18, %20 : vector<8x128xi32>
    %c4_i32 = arith.constant 4 : i32
    %22 = vector.broadcast %c4_i32 : i32 to vector<8x128xi32>
    %23 = arith.cmpi slt, %19, %22 : vector<8x128xi32>
    %24 = arith.andi %21, %23 : vector<8x128xi1>
    %c0_5 = arith.constant 0 : index
    %c0_6 = arith.constant 0 : index
    %25 = vector.load %arg2[%c0_5, %c0_6] : memref<8x128xf32, #tpu.memory_space<vmem>>, vector<8x128xf32>
    %c0_7 = arith.constant 0 : index
    %c0_8 = arith.constant 0 : index
    %26 = vector.load %arg3[%c0_7, %c0_8] : memref<8x128xf32, #tpu.memory_space<vmem>>, vector<8x128xf32>
    %c0_9 = arith.constant 0 : index
    %c0_10 = arith.constant 0 : index
    %27 = vector.load %arg4[%c0_9, %c0_10] : memref<8x128xf32, #tpu.memory_space<vmem>>, vector<8x128xf32>
    %28 = arith.subf %25, %26 : vector<8x128xf32>
    %29 = arith.divf %28, %27 : vector<8x128xf32>
    %cst_11 = arith.constant -5.000000e-01 : f32
    %30 = vector.broadcast %cst_11 : f32 to vector<8x128xf32>
    %31 = arith.mulf %30, %29 : vector<8x128xf32>
    %32 = arith.mulf %31, %29 : vector<8x128xf32>
    %33 = math.log %27 : vector<8x128xf32>
    %34 = arith.subf %32, %33 : vector<8x128xf32>
    %cst_12 = arith.constant 0.918938517 : f32
    %35 = vector.broadcast %cst_12 : f32 to vector<8x128xf32>
    %36 = arith.subf %34, %35 : vector<8x128xf32>
    %cst_13 = arith.constant 0.000000e+00 : f32
    %37 = vector.broadcast %cst_13 : f32 to vector<8x128xf32>
    %38 = arith.select %24, %36, %37 : vector<8x128xi1>, vector<8x128xf32>
    %39 = vector.shape_cast %38 : vector<8x128xf32> to vector<1x8x128xf32>
    %cst_14 = arith.constant dense<0.000000e+00> : vector<1xf32>
    %40 = vector.multi_reduction <add>, %39, %cst_14 [1, 2] : vector<1x8x128xf32> to vector<1xf32>
    %41 = vector.shape_cast %40 : vector<1xf32> to vector<1x1x1xf32>
    %42 = vector.extract %41[0, 0, 0] : f32 from vector<1x1x1xf32>
    %43 = vector.broadcast %42 : f32 to vector<1x1xf32>
    %cst_15 = arith.constant 5.000000e-01 : f32
    %44 = vector.broadcast %cst_15 : f32 to vector<1x1xf32>
    %45 = arith.mulf %17, %44 : vector<1x1xf32>
    %cst_16 = arith.constant 1.250000e-01 : f32
    %46 = vector.broadcast %cst_16 : f32 to vector<1x1xf32>
    %47 = arith.mulf %43, %46 : vector<1x1xf32>
    %48 = arith.addf %45, %47 : vector<1x1xf32>
    %cst_17 = arith.constant -5.000000e-01 : f32
    %49 = vector.broadcast %cst_17 : f32 to vector<1x1xf32>
    %50 = arith.mulf %49, %48 : vector<1x1xf32>
    %c0_18 = arith.constant 0 : index
    %c0_19 = arith.constant 0 : index
    %51 = vector.load %arg5[%c0_18, %c0_19] : memref<1x1xf32, #tpu.memory_space<vmem>>, vector<1x1xf32>
    tpu.vector_store %arg5[%c0_18, %c0_19], %50 {strides = array<i32>} : memref<1x1xf32, #tpu.memory_space<vmem>>, vector<1x1xf32>,
    return
  }
}

</mosaic_0001>

<llo_original>
// kernel: tpu_custom_call.1
$region0: #{tpu_custom_call.1}
  #allocation0 [shape = 'u32[]', space=smem, size = 0x4, offset = 0x4, fixed_abs, tag = 'smem constant byte address 0x4 - core index']
  #allocation1 [shape = 'u32[144,128]{1,0:T(1,128)}', space=vmem, size = 0x12000, scoped, tag = 'internal scratch']
  %s0 = inlined_call_operand.hbm [shape: f32[8,128], index: 0, kind: input, shape index: {}]
  %s1 = inlined_call_operand.hbm [shape: f32[8,128], index: 1, kind: input, shape index: {}]
  %s2 = inlined_call_operand.hbm [shape: f32[8,128], index: 2, kind: input, shape index: {}]
  %s3 = inlined_call_operand.vmem [shape: f32[8,128], index: 3, kind: input, shape index: {}]
  %s4 = inlined_call_operand.hbm [shape: f32[8,128], index: 4, kind: input, shape index: {}]
  %s5 = inlined_call_operand.hbm [shape: f32[1,1], index: 5, kind: output, shape index: {}]
  %s6 = sld [smem:[#allocation0]]
  $region46: #{tpu_custom_call.1} parent=0
    _
  %s8 = ssub.s32 1, %s6
  %s9 = scalar_select 0, %s8, %s6
  $region1: #{tpu_custom_call.1} parent=0
    #allocation2 [shape = 'u8[4096]{0}', space=vmem, size = 0x1000, scoped, tag = 'input window, operand 0, single buffered']
    #allocation3 [shape = 's32[1]{0}', space=sflag, size = 0x4, scoped, tag = 'scoped memory for tpu_custom_call.1']
    #allocation4 [shape = 's32[1]{0}', space=sflag, size = 0x4, scoped, tag = 'scoped memory for tpu_custom_call.1']
    #allocation5 [shape = 'u8[4096]{0}', space=vmem, size = 0x1000, scoped, tag = 'input window, operand 1, single buffered']
    #allocation6 [shape = 's32[1]{0}', space=sflag, size = 0x4, scoped, tag = 'scoped memory for tpu_custom_call.1']
    #allocation7 [shape = 'u8[4096]{0}', space=vmem, size = 0x1000, scoped, tag = 'input window, operand 2, single buffered']
    #allocation8 [shape = 'u8[4096]{0}', space=vmem, size = 0x1000, scoped, tag = 'input window, operand 4, single buffered']
    #allocation9 [shape = 's32[1]{0}', space=sflag, size = 0x4, scoped, tag = 'scoped memory for tpu_custom_call.1']
    #allocation10 [shape = 'u8[512]{0}', space=vmem, size = 0x400, scoped, tag = 'output window, operand 0, single buffered']
    %10 = vsyncpa [#allocation3], 0
    %11 = vsyncpa [#allocation6], 0
    %12 = vsyncpa [#allocation9], 0
    %13 = vsyncpa [#allocation4], 0
    // Predicated region
    $region2: #{tpu_custom_call.1} parent=1 // pred_check
      _
    $region3: #{tpu_custom_call.1} parent=1 // pred_check_branch
      %15 = sbr.rel (0) target = $region5
    $region4: #{tpu_custom_call.1} parent=1 // pred_region
      %s17 = ssub.s32 128, 128
      %18 = vsyncadd [#allocation3], %s17
      %s20 = sshll.u32 [#allocation2], 4
      %s21 = int_to_ptr.vmem [resolvable:$true] %s20
      %23 = dma.hbm_to_vmem [thread:$0]  %s0, 128, %s21, [#allocation3]
    $region5: #{tpu_custom_call.1} parent=1 // pred_fallthru
      _
    // Predicated region
    $region6: #{tpu_custom_call.1} parent=1 // pred_check
      _
    $region7: #{tpu_custom_call.1} parent=1 // pred_check_branch
      %25 = sbr.rel (0) target = $region9
    $region8: #{tpu_custom_call.1} parent=1 // pred_region
      %s27 = ssub.s32 128, 128
      %28 = vsyncadd [#allocation6], %s27
      %s30 = sshll.u32 [#allocation5], 4
      %s31 = int_to_ptr.vmem [resolvable:$true] %s30
      %33 = dma.hbm_to_vmem [thread:$0]  %s1, 128, %s31, [#allocation6]
    $region9: #{tpu_custom_call.1} parent=1 // pred_fallthru
      _
    // Predicated region
    $region10: #{tpu_custom_call.1} parent=1 // pred_check
      _
    $region11: #{tpu_custom_call.1} parent=1 // pred_check_branch
      %35 = sbr.rel (0) target = $region13
    $region12: #{tpu_custom_call.1} parent=1 // pred_region
      %s37 = ssub.s32 128, 128
      %38 = vsyncadd [#allocation6], %s37
      %s40 = sshll.u32 [#allocation7], 4
      %s41 = int_to_ptr.vmem [resolvable:$true] %s40
      %43 = dma.hbm_to_vmem [thread:$0]  %s2, 128, %s41, [#allocation6]
    $region13: #{tpu_custom_call.1} parent=1 // pred_fallthru
      _
    // Predicated region
    $region14: #{tpu_custom_call.1} parent=1 // pred_check
      _
    $region15: #{tpu_custom_call.1} parent=1 // pred_check_branch
      %45 = sbr.rel (0) target = $region17
    $region16: #{tpu_custom_call.1} parent=1 // pred_region
      _
    $region17: #{tpu_custom_call.1} parent=1 // pred_fallthru
      _
    // Predicated region
    $region18: #{tpu_custom_call.1} parent=1 // pred_check
      _
    $region19: #{tpu_custom_call.1} parent=1 // pred_check_branch
      %47 = sbr.rel (0) target = $region21
    $region20: #{tpu_custom_call.1} parent=1 // pred_region
      %s49 = ssub.s32 128, 128
      %50 = vsyncadd [#allocation9], %s49
      %s52 = sshll.u32 [#allocation8], 4
      %s53 = int_to_ptr.vmem [resolvable:$true] %s52
      %55 = dma.hbm_to_vmem [thread:$0]  %s4, 128, %s53, [#allocation9]
    $region21: #{tpu_custom_call.1} parent=1 // pred_fallthru
      _
    // Predicated region
    $region22: #{tpu_custom_call.1} parent=1 // pred_check
      _
    $region23: #{tpu_custom_call.1} parent=1 // pred_check_branch
      %57 = sbr.rel (0) target = $region25
    $region24: #{tpu_custom_call.1} parent=1 // pred_region
      %58 = dma.done [#allocation3], 128
    $region25: #{tpu_custom_call.1} parent=1 // pred_fallthru
      _
    // Predicated region
    $region26: #{tpu_custom_call.1} parent=1 // pred_check
      _
    $region27: #{tpu_custom_call.1} parent=1 // pred_check_branch
      %60 = sbr.rel (0) target = $region29
    $region28: #{tpu_custom_call.1} parent=1 // pred_region
      %61 = dma.done [#allocation6], 128
    $region29: #{tpu_custom_call.1} parent=1 // pred_fallthru
      _
    // Predicated region
    $region30: #{tpu_custom_call.1} parent=1 // pred_check
      _
    $region31: #{tpu_custom_call.1} parent=1 // pred_check_branch
      %63 = sbr.rel (0) target = $region33
    $region32: #{tpu_custom_call.1} parent=1 // pred_region
      %64 = dma.done [#allocation6], 128
    $region33: #{tpu_custom_call.1} parent=1 // pred_fallthru
      _
    // Predicated region
    $region34: #{tpu_custom_call.1} parent=1 // pred_check
      _
    $region35: #{tpu_custom_call.1} parent=1 // pred_check_branch
      %66 = sbr.rel (0) target = $region37
    $region36: #{tpu_custom_call.1} parent=1 // pred_region
      %67 = dma.done [#allocation9], 128
    $region37: #{tpu_custom_call.1} parent=1 // pred_fallthru
      _
    %v68 = vld [vmem:[#allocation5] sm:$0xff]
    %69 = vmax.xlane.f32.xlu0 %v68
    %v70 = vpop.xlane.xlu0 %69
    %v71 = vsub.f32 %v68, %v70
    %v72 = vmul.f32 %v71, 1.442695
    %v73 = vpow.pop %v72
    %74 = vadd.xlane.f32.xlu0 %v73
    %v75 = vpop.xlane.xlu0 %74
    %v76 = vlog2.pop %v75
    %v77 = vmul.f32 %v76, 0.6931472
    %v78 = vsub.f32 %v71, %v77
    %v79 = vld [vmem:[#allocation2] sm:$0xff]
    %v80 = vmul.f32 %v79, %v78
    %81 = vadd.xlane.f32.xlu0 %v80
    %v82 = vpop.xlane.xlu0 %81
    %v83 = vrot.slane %v82, 4
    %v84 = vadd.f32 %v82, %v83
    %v85 = vrot.slane %v84, 2
    %v86 = vadd.f32 %v84, %v85
    %v87 = vrot.slane %v86, 1
    %v88 = vadd.f32 %v86, %v87
    %s89 = vtos %v88
    %v90 = vstv %s89
    %v91 = vlaneseq
    %v92 = vshrl.u32 %v91, 7
    %v93 = vlaneseq
    %v94 = vand.u32 %v93, 127
    %vm95 = vcmp.lt.s32.totalorder %v92, 2
    %vm96 = vcmp.lt.s32.totalorder %v94, 4
    %vm97 = vmand %vm95, %vm96
    %v98 = vld [vmem:[#allocation7] sm:$0xff]
    %v99 = vld [vmem:[%s3] sm:$0xff]
    %v100 = vld [vmem:[#allocation8] sm:$0xff]
    %v101 = vsub.f32 %v98, %v99
    %v102 = vrcp.pop %v100
    %v103 = vmul.f32 %v101, %v102
    %v104 = vmul.f32 %v103, -0.5
    %v105 = vmul.f32 %v104, %v103
    %v106 = vlog2.pop %v100
    %v107 = vmul.f32 %v106, 0.6931472
    %v108 = vsub.f32 %v105, %v107
    %v109 = vsub.f32 %v108, 0.9189385
    %v110 = vsel %vm97, %v109, 0.0
    %111 = vadd.xlane.f32.xlu0 %v110
    %v112 = vpop.xlane.xlu0 %111
    %v113 = vrot.slane %v112, 4
    %v114 = vadd.f32 %v112, %v113
    %v115 = vrot.slane %v114, 2
    %v116 = vadd.f32 %v114, %v115
    %v117 = vrot.slane %v116, 1
    %v118 = vadd.f32 %v116, %v117
    %s119 = vtos %v118
    %v120 = vstv %s119
    %v121 = vmul.f32 %v90, 0.5
    %v122 = vmul.f32 %v120, 0.125
    %v123 = vadd.f32 %v121, %v122
    %v124 = vmul.f32 %v123, -0.5
    %vm125 = vcmask 0
    %126 = vst.msk [vmem:[#allocation10] sm:$0x1] %vm125, %v124
    // Predicated region
    $region38: #{tpu_custom_call.1} parent=1 // pred_check
      _
    $region39: #{tpu_custom_call.1} parent=1 // pred_check_branch
      %128 = sbr.rel (0) target = $region41
    $region40: #{tpu_custom_call.1} parent=1 // pred_region
      %s130 = ssub.s32 16, 16
      %131 = vsyncadd [#allocation4], %s130
      %s133 = sshll.u32 [#allocation10], 4
      %s134 = int_to_ptr.vmem [resolvable:$true] %s133
      %136 = dma.vmem_to_hbm [thread:$0]  %s134, 16, %s5, [#allocation4]
    $region41: #{tpu_custom_call.1} parent=1 // pred_fallthru
      _
    // Predicated region
    $region42: #{tpu_custom_call.1} parent=1 // pred_check
      _
    $region43: #{tpu_custom_call.1} parent=1 // pred_check_branch
      %138 = sbr.rel (0) target = $region45
    $region44: #{tpu_custom_call.1} parent=1 // pred_region
      %139 = dma.done [#allocation4], 16
    $region45: #{tpu_custom_call.1} parent=1 // pred_fallthru
      _
    %140 = vsyncpa [#allocation3], 1
    %141 = vsyncpa [#allocation6], 1
    %142 = vsyncpa [#allocation9], 1
    %143 = vsyncpa [#allocation4], 1

</llo_original>
